<compile_context>
chip_gen: v7x
topology: tpu7x:2x2x1
jax: 0.10.0
libtpu: 0.0.40
codegen_flags: <defaults>
</compile_context>

<pallas_src>
import jax
import jax.numpy as jnp
from jax.experimental import pallas as pl
from jax.experimental.pallas import tpu as pltpu

LANE = 128
SUBLANE = 8


def _round_up(x, m):
    return (x + m - 1) // m * m


# ----------------------------------------------------------------------------
# Pallas kernel: LayerNorm(stats only) -> (inference) dropout -> Linear head
# (gamma/beta already folded into w_ref / b_ref by the wrapper)
# ----------------------------------------------------------------------------
def ner_head_kernel(h_ref, w_ref, b_ref, o_ref):
    # h_ref: (TM, H) bf16 tile of token hidden states.
    h = h_ref[...].astype(jnp.float32)

    # Final transformer LayerNorm: statistics in f32.
    mean = jnp.mean(h, axis=-1, keepdims=True)
    var = jnp.mean((h - mean) * (h - mean), axis=-1, keepdims=True)
    hn = (h - mean) * jax.lax.rsqrt(var + 1e-12)

    # Dropout: inference mode => identity.
    # TODO(synk): training-mode dropout would use pltpu.prng_seed/prng_random_bits.

    # Tags linear head on the MXU: bf16 inputs, f32 accumulation, lane-dense N.
    logits = jnp.dot(hn.astype(jnp.bfloat16), w_ref[...],
                     preferred_element_type=jnp.float32)
    o_ref[...] = logits + b_ref[...].astype(jnp.float32)


def ner_head(hidden, gamma, beta, w, b, *, tile_m=512):
    """hidden: [B, S, H] -> logits [B, S, n_tags] via a single Pallas kernel."""
    B, S, H = hidden.shape
    n_tags = w.shape[-1]
    M = B * S

    # ---- Fold LN affine into the linear head (wrapper-side, one-time):
    #   (hn * gamma + beta) @ W + b == hn @ (gamma[:, None] * W) + (beta @ W + b)
    gamma_v = gamma.reshape(H).astype(jnp.float32)
    beta_v = beta.reshape(H).astype(jnp.float32)
    bias_v = b.reshape(n_tags).astype(jnp.float32)
    w_f32 = w.astype(jnp.float32)
    w_folded = gamma_v[:, None] * w_f32                       # (H, n_tags)
    b_folded = beta_v @ w_f32 + bias_v                        # (n_tags,)

    # ---- Lane-dense padded output width (multiple of 128): full vst, full MXU N.
    n_pad = _round_up(n_tags, LANE)
    w_pad = jnp.zeros((H, n_pad), jnp.bfloat16)
    w_pad = w_pad.at[:, :n_tags].set(w_folded.astype(jnp.bfloat16))
    b_pad = jnp.zeros((1, n_pad), jnp.float32).at[:, :n_tags].set(b_folded)

    # ---- Row tiling: biggest tile up to tile_m target; pad M so no assert/tail.
    tile_m_eff = max(SUBLANE, min(tile_m, _round_up(M, SUBLANE)))
    tile_m_eff = _round_up(tile_m_eff, SUBLANE)
    m_pad = _round_up(M, tile_m_eff)

    # bf16 hidden halves the dominant HBM read of this memory-bound head.
    h2 = hidden.reshape(M, H).astype(jnp.bfloat16)
    if m_pad != M:
        # Padded zero rows normalize to 0 (var+eps > 0) and are sliced off below.
        h2 = jnp.pad(h2, ((0, m_pad - M), (0, 0)))

    # ---- Explicit scoped-VMEM budget (double-buffered in/out tiles + resident
    # weights), with headroom, capped below v7x's 64 MiB physical VMEM.
    vmem_bytes = (2 * tile_m_eff * H * 2          # double-buffered bf16 hidden tiles
                  + 2 * tile_m_eff * n_pad * 4    # double-buffered f32 output tiles
                  + H * n_pad * 2 + n_pad * 4     # resident folded weight + bias
                  + tile_m_eff * n_pad * 4)       # in-kernel f32 intermediates
    vmem_limit = int(min(max(4 * vmem_bytes, 16 << 20), 48 << 20))

    out = pl.pallas_call(
        ner_head_kernel,
        out_shape=jax.ShapeDtypeStruct((m_pad, n_pad), jnp.float32),
        grid_spec=pltpu.PrefetchScalarGridSpec(
            num_scalar_prefetch=0,
            grid=(m_pad // tile_m_eff,),
            in_specs=[
                pl.BlockSpec((tile_m_eff, H), lambda i: (i, 0)),  # hidden tile
                pl.BlockSpec((H, n_pad), lambda i: (0, 0)),       # folded weight
                pl.BlockSpec((1, n_pad), lambda i: (0, 0)),       # folded bias
            ],
            out_specs=pl.BlockSpec((tile_m_eff, n_pad), lambda i: (i, 0)),
        ),
        compiler_params=pltpu.CompilerParams(
            dimension_semantics=("parallel",),   # shards grid across v7x's 2 TCs
            vmem_limit_bytes=vmem_limit),
    )(h2, w_pad, b_pad)

    return out[:M, :n_tags].reshape(B, S, n_tags)


# ----------------------------------------------------------------------------
# Deterministic stand-in for the external HF transformer (plain-JAX glue):
# word + position + token-type embedding sum.  Attention/FFN stack of the
# injected transformer is out of scope for this module's own forward.
# TODO(synk): the embedding gather+sum could be fused into the Pallas kernel
# via scalar-prefetched ids + pl.Element row gather to halve HBM traffic.
# ----------------------------------------------------------------------------
def embed_standin(params, input_ids, token_type_ids):
    B, S = input_ids.shape
    word = jnp.take(params["word_emb"], input_ids, axis=0)          # [B,S,H]
    ttype = jnp.take(params["type_emb"], token_type_ids, axis=0)    # [B,S,H]
    pos = params["pos_emb"][:S][None, :, :]                         # [1,S,H]
    return word + ttype + pos


def ner_network_forward(params, input_ids, masks, token_type_ids,
                        target_tags, offsets):
    # masks / target_tags / offsets are accepted but unused, matching the
    # PyTorch forward signature (stand-in transformer ignores attention mask).
    del masks, target_tags, offsets
    hidden = embed_standin(params, input_ids, token_type_ids)       # [B,S,H]
    return ner_head(hidden, params["ln_gamma"], params["ln_beta"],
                    params["tag_w"], params["tag_b"])               # [B,S,T]


# ----------------------------------------------------------------------------
# Deterministic parameter init + pure-JAX reference + demo run
# ----------------------------------------------------------------------------
def init_params(key, vocab=100, type_vocab=2, max_pos=64, hidden=32, n_tags=9):
    ks = jax.random.split(key, 6)
    scale = 0.02
    return {
        "word_emb": scale * jax.random.normal(ks[0], (vocab, hidden), jnp.float32),
        "type_emb": scale * jax.random.normal(ks[1], (type_vocab, hidden), jnp.float32),
        "pos_emb":  scale * jax.random.normal(ks[2], (max_pos, hidden), jnp.float32),
        "ln_gamma": jnp.ones((1, hidden), jnp.float32),
        "ln_beta":  jnp.zeros((1, hidden), jnp.float32),
        "tag_w":    scale * jax.random.normal(ks[3], (hidden, n_tags), jnp.float32),
        "tag_b":    jnp.zeros((1, n_tags), jnp.float32),
    }


def reference_forward(params, input_ids, token_type_ids):
    h = embed_standin(params, input_ids, token_type_ids)
    mean = jnp.mean(h, axis=-1, keepdims=True)
    var = jnp.mean((h - mean) ** 2, axis=-1, keepdims=True)
    hn = (h - mean) * jax.lax.rsqrt(var + 1e-12)
    hn = hn * params["ln_gamma"][0] + params["ln_beta"][0]
    return hn @ params["tag_w"] + params["tag_b"][0]


if __name__ == "__main__":
    B, S, H, T = 2, 8, 32, 9
    key = jax.random.PRNGKey(0)
    k_param, k_ids, k_tags = jax.random.split(key, 3)

    params = init_params(k_param, hidden=H, n_tags=T, max_pos=S)

    input_ids = jax.random.randint(k_ids, (B, S), 0, 100, dtype=jnp.int32)
    masks = jnp.ones((B, S), jnp.int32)
    token_type_ids = jnp.zeros((B, S), jnp.int32)
    target_tags = jax.random.randint(k_tags, (B, S), 0, T, dtype=jnp.int32)
    offsets = jnp.tile(jnp.arange(S, dtype=jnp.int32)[None, :], (B, 1))

    logits = ner_network_forward(params, input_ids, masks, token_type_ids,
                                 target_tags, offsets)
    logits = jax.block_until_ready(logits)

    ref = reference_forward(params, input_ids, token_type_ids)
    assert logits.shape == (B, S, T)
    # bf16 hidden read + bf16 MXU inputs => loosened tolerance vs f32 reference.
    assert jnp.allclose(logits, ref, atol=1e-2, rtol=1e-2), (
        float(jnp.max(jnp.abs(logits - ref))))

    print("KERNEL_OK")
</pallas_src>

<mosaic_0001>
module attributes {stable_mosaic.version = 11 : i64} {
  func.func @ner_head_kernel(%arg0: i32, %arg1: memref<16x32xbf16, #tpu.memory_space<vmem>>, %arg2: memref<32x128xbf16, #tpu.memory_space<vmem>>, %arg3: memref<1x128xf32, #tpu.memory_space<vmem>>, %arg4: memref<16x128xf32, #tpu.memory_space<vmem>>) attributes {dimension_semantics = [#tpu.dimension_semantics<parallel>], iteration_bounds = array<i64: 1>, scalar_prefetch = 0 : i64, scratch_operands = 0 : i64, tpu.core_type = #tpu.core_type<tc>, window_params = [{transform_indices = @transform_0, window_bounds = array<i64: 16, 32>}, {pipeline_mode = #tpu.pipeline_mode<synchronous>, transform_indices = @transform_1, window_bounds = array<i64: 32, 128>}, {pipeline_mode = #tpu.pipeline_mode<synchronous>, transform_indices = @transform_2, window_bounds = array<i64: 1, 128>}, {transform_indices = @transform_3, window_bounds = array<i64: 16, 128>}]} {
    %c0 = arith.constant 0 : index
    %c0_0 = arith.constant 0 : index
    %0 = vector.load %arg1[%c0, %c0_0] : memref<16x32xbf16, #tpu.memory_space<vmem>>, vector<16x32xbf16>
    %1 = arith.extf %0 : vector<16x32xbf16> to vector<16x32xf32>
    %cst = arith.constant dense<0.000000e+00> : vector<16xf32>
    %2 = vector.multi_reduction <add>, %1, %cst [1] : vector<16x32xf32> to vector<16xf32>
    %3 = vector.shape_cast %2 : vector<16xf32> to vector<16x1xf32>
    %cst_1 = arith.constant 3.200000e+01 : f32
    %4 = vector.broadcast %cst_1 : f32 to vector<16x1xf32>
    %5 = arith.divf %3, %4 : vector<16x1xf32>
    %6 = vector.broadcast %5 : vector<16x1xf32> to vector<16x32xf32>
    %7 = arith.subf %1, %6 : vector<16x32xf32>
    %8 = vector.broadcast %5 : vector<16x1xf32> to vector<16x32xf32>
    %9 = arith.subf %1, %8 : vector<16x32xf32>
    %10 = arith.mulf %7, %9 : vector<16x32xf32>
    %cst_2 = arith.constant dense<0.000000e+00> : vector<16xf32>
    %11 = vector.multi_reduction <add>, %10, %cst_2 [1] : vector<16x32xf32> to vector<16xf32>
    %12 = vector.shape_cast %11 : vector<16xf32> to vector<16x1xf32>
    %cst_3 = arith.constant 3.200000e+01 : f32
    %13 = vector.broadcast %cst_3 : f32 to vector<16x1xf32>
    %14 = arith.divf %12, %13 : vector<16x1xf32>
    %15 = vector.broadcast %5 : vector<16x1xf32> to vector<16x32xf32>
    %16 = arith.subf %1, %15 : vector<16x32xf32>
    %cst_4 = arith.constant 9.99999996E-13 : f32
    %17 = vector.broadcast %cst_4 : f32 to vector<16x1xf32>
    %18 = arith.addf %14, %17 : vector<16x1xf32>
    %19 = math.rsqrt %18 : vector<16x1xf32>
    %20 = vector.broadcast %19 : vector<16x1xf32> to vector<16x32xf32>
    %21 = arith.mulf %16, %20 : vector<16x32xf32>
    %22 = arith.truncf %21 : vector<16x32xf32> to vector<16x32xbf16>
    %c0_5 = arith.constant 0 : index
    %c0_6 = arith.constant 0 : index
    %23 = vector.load %arg2[%c0_5, %c0_6] : memref<32x128xbf16, #tpu.memory_space<vmem>>, vector<32x128xbf16>
    %cst_7 = arith.constant dense<0.000000e+00> : vector<16x128xf32>
    %24 = tpu.matmul %22, %23, %cst_7 {dimension_numbers = #tpu.dot_dimension_numbers<[1], [0], [0], [1], [0, 0, 1, 1], [], []>} : vector<16x32xbf16>, vector<32x128xbf16>, vector<16x128xf32> -> vector<16x128xf32>
    %c0_8 = arith.constant 0 : index
    %c0_9 = arith.constant 0 : index
    %25 = vector.load %arg3[%c0_8, %c0_9] : memref<1x128xf32, #tpu.memory_space<vmem>>, vector<1x128xf32>
    %26 = vector.broadcast %25 : vector<1x128xf32> to vector<16x128xf32>
    %27 = arith.addf %24, %26 : vector<16x128xf32>
    %c0_10 = arith.constant 0 : index
    %c0_11 = arith.constant 0 : index
    %28 = vector.load %arg4[%c0_10, %c0_11] : memref<16x128xf32, #tpu.memory_space<vmem>>, vector<16x128xf32>
    tpu.vector_store %arg4[%c0_10, %c0_11], %27 {strides = array<i32>} : memref<16x128xf32, #tpu.memory_space<vmem>>, vector<16x128xf32>,
    return
  }
  func.func @transform_0(%arg0: i32) -> (i32, i32) {
    %c0_i32 = arith.constant 0 : i32
    %c0_i32_0 = arith.constant 0 : i32
    return %arg0, %c0_i32 : i32, i32
  }
  func.func @transform_1(%arg0: i32) -> (i32, i32) {
    %c0_i32 = arith.constant 0 : i32
    %c0_i32_0 = arith.constant 0 : i32
    %c0_i32_1 = arith.constant 0 : i32
    return %c0_i32, %c0_i32_0 : i32, i32
  }
  func.func @transform_2(%arg0: i32) -> (i32, i32) {
    %c0_i32 = arith.constant 0 : i32
    %c0_i32_0 = arith.constant 0 : i32
    %c0_i32_1 = arith.constant 0 : i32
    return %c0_i32, %c0_i32_0 : i32, i32
  }
  func.func @transform_3(%arg0: i32) -> (i32, i32) {
    %c0_i32 = arith.constant 0 : i32
    %c0_i32_0 = arith.constant 0 : i32
    return %arg0, %c0_i32 : i32, i32
  }
}

</mosaic_0001>

<llo_original>
// kernel: tpu_custom_call.1
$region0: #{tpu_custom_call.1}
  #allocation0 [shape = 'u32[]', space=smem, size = 0x4, offset = 0x4, fixed_abs, tag = 'smem constant byte address 0x4 - core index']
  #allocation1 [shape = 'u32[144,128]{1,0:T(1,128)}', space=vmem, size = 0x12000, scoped, tag = 'internal scratch']
  %s0 = inlined_call_operand.hbm [shape: bf16[16,32], index: 0, kind: input, shape index: {}]
  %s1 = inlined_call_operand.hbm [shape: bf16[32,128], index: 1, kind: input, shape index: {}]
  %s2 = inlined_call_operand.vmem [shape: f32[1,128], index: 2, kind: input, shape index: {}]
  %s3 = inlined_call_operand.hbm [shape: f32[16,128], index: 3, kind: output, shape index: {}]
  %s4 = sld [smem:[#allocation0]]
  $region30: #{tpu_custom_call.1} parent=0
    _
  %s6 = ssub.s32 1, %s4
  %s7 = scalar_select 0, %s6, %s4
  $region1: #{tpu_custom_call.1} parent=0
    #allocation2 [shape = 'u8[4096]{0}', space=vmem, size = 0x1000, scoped, tag = 'input window, operand 0, single buffered']
    #allocation3 [shape = 's32[1]{0}', space=sflag, size = 0x4, scoped, tag = 'scoped memory for tpu_custom_call.1']
    #allocation4 [shape = 's32[1]{0}', space=sflag, size = 0x4, scoped, tag = 'scoped memory for tpu_custom_call.1']
    #allocation5 [shape = 'u8[8192]{0}', space=vmem, size = 0x2000, scoped, tag = 'input window, operand 1, single buffered']
    #allocation6 [shape = 's32[1]{0}', space=sflag, size = 0x4, scoped, tag = 'scoped memory for tpu_custom_call.1']
    #allocation7 [shape = 'u8[8192]{0}', space=vmem, size = 0x2000, scoped, tag = 'output window, operand 0, single buffered']
    %8 = vsyncpa [#allocation3], 0
    %9 = vsyncpa [#allocation6], 0
    %10 = vsyncpa [#allocation4], 0
    // Predicated region
    $region2: #{tpu_custom_call.1} parent=1 // pred_check
      _
    $region3: #{tpu_custom_call.1} parent=1 // pred_check_branch
      %12 = sbr.rel (0) target = $region5
    $region4: #{tpu_custom_call.1} parent=1 // pred_region
      %s14 = ssub.s32 128, 128
      %15 = vsyncadd [#allocation3], %s14
      %s16 = sshll.u32 [#allocation2], 4
      %s17 = int_to_ptr.vmem [resolvable:$true] %s16
      %22 = dma.hbm_to_vmem [thread:$0]  %s0, 128, %s17, [#allocation3], 64, 64, 4
    $region5: #{tpu_custom_call.1} parent=1 // pred_fallthru
      _
    // Predicated region
    $region6: #{tpu_custom_call.1} parent=1 // pred_check
      _
    $region7: #{tpu_custom_call.1} parent=1 // pred_check_branch
      %24 = sbr.rel (0) target = $region9
    $region8: #{tpu_custom_call.1} parent=1 // pred_region
      %s26 = ssub.s32 256, 256
      %27 = vsyncadd [#allocation6], %s26
      %s28 = sshll.u32 [#allocation5], 4
      %s29 = int_to_ptr.vmem [resolvable:$true] %s28
      %34 = dma.hbm_to_vmem [thread:$0]  %s1, 256, %s29, [#allocation6], 64, 64, 4
    $region9: #{tpu_custom_call.1} parent=1 // pred_fallthru
      _
    // Predicated region
    $region10: #{tpu_custom_call.1} parent=1 // pred_check
      _
    $region11: #{tpu_custom_call.1} parent=1 // pred_check_branch
      %36 = sbr.rel (0) target = $region13
    $region12: #{tpu_custom_call.1} parent=1 // pred_region
      _
    $region13: #{tpu_custom_call.1} parent=1 // pred_fallthru
      _
    // Predicated region
    $region14: #{tpu_custom_call.1} parent=1 // pred_check
      _
    $region15: #{tpu_custom_call.1} parent=1 // pred_check_branch
      %38 = sbr.rel (0) target = $region17
    $region16: #{tpu_custom_call.1} parent=1 // pred_region
      %39 = dma.done [#allocation3], 128
    $region17: #{tpu_custom_call.1} parent=1 // pred_fallthru
      _
    // Predicated region
    $region18: #{tpu_custom_call.1} parent=1 // pred_check
      _
    $region19: #{tpu_custom_call.1} parent=1 // pred_check_branch
      %41 = sbr.rel (0) target = $region21
    $region20: #{tpu_custom_call.1} parent=1 // pred_region
      %42 = dma.done [#allocation6], 256
    $region21: #{tpu_custom_call.1} parent=1 // pred_fallthru
      _
    %v44 = vld [vmem:[#allocation2] sm:$0xf]
    %v45 = vld [vmem:[#allocation2 + $0x4] sm:$0xf]
    %v46 = vunpack.c.l.bf16 %v44
    %v47 = vunpack.c.l.bf16 %v45
    %vm48 = vcmask 261120
    %v49 = vsel %vm48, %v46, 0.0
    %50 = vadd.xlane.f32.xlu0 %v49
    %v51 = vpop.xlane.xlu0 %50
    %v52 = vsel %vm48, %v47, 0.0
    %53 = vadd.xlane.f32.xlu0 %v52
    %v54 = vpop.xlane.xlu0 %53
    %v55 = vrcp.pop 32.0
    %v56 = vmul.f32 %v51, %v55
    %v57 = vmul.f32 %v54, %v55
    %v58 = vsub.f32 %v46, %v56
    %v59 = vsub.f32 %v47, %v57
    %v60 = vmul.f32 %v58, %v58
    %v61 = vmul.f32 %v59, %v59
    %v62 = vsel %vm48, %v60, 0.0
    %63 = vadd.xlane.f32.xlu0 %v62
    %v64 = vpop.xlane.xlu0 %63
    %v65 = vsel %vm48, %v61, 0.0
    %66 = vadd.xlane.f32.xlu0 %v65
    %v67 = vpop.xlane.xlu0 %66
    %v68 = vmul.f32 %v64, %v55
    %v69 = vmul.f32 %v67, %v55
    %v70 = vadd.f32 %v68, 1e-12
    %v71 = vadd.f32 %v69, 1e-12
    %v72 = vrsqrt.pop %v70
    %v73 = vrsqrt.pop %v71
    %v74 = vmul.f32 %v58, %v72
    %v75 = vmul.f32 %v59, %v73
    %v76 = vpack.c.bf16 %v75, %v74
    %v77 = vld [vmem:[#allocation5] sm:$0xf]
    %v78 = vld [vmem:[#allocation5 + $0x4] sm:$0xf]
    %v79 = vld [vmem:[#allocation5 + $0x8] sm:$0xf]
    %v80 = vld [vmem:[#allocation5 + $0xc] sm:$0xf]
    %v81 = vld [vmem:[%s2] sm:$0x1]
    %v83 = vlaneseq
    %v84 = vshrl.u32 %v83, 7
    %v85 = vsub.s32 0, %v84
    %v86 = vrot.slane %v81, %v85
    %v92 = vunpack.c.l.b16 %v77
    %v93 = vunpack.c.l.b16 %v78
    %v94 = vunpack.c.l.b16 %v79
    %v95 = vunpack.c.l.b16 %v80
    %v96 = vpack.c.b16 %v93, %v92
    %v97 = vpack.c.b16 %v95, %v94
    %v101 = vsel %vm48, %v76, 0
    %103 = vmatprep.subr.bf16.mxu0 0
    %104 = vmatpush1.bf16.msra.mxu0 %v96
    %105 = vmatprep.subr.bf16.mxu0 0
    %106 = vmatpush1.bf16.msra.mxu0 %v97
    %107 = vmatprep.subr.bf16.mxu0 0
    %108 = vmatpush1.bf16.msra.mxu0 0
    %109 = vmatprep.subr.bf16.mxu0 0
    %110 = vmatpush1.bf16.msra.mxu0 0
    %111 = vmatprep.subr.bf16.mxu0 0
    %112 = vmatpush1.bf16.msra.mxu0 0
    %113 = vmatprep.subr.bf16.mxu0 0
    %114 = vmatpush1.bf16.msra.mxu0 0
    %115 = vmatprep.subr.bf16.mxu0 0
    %116 = vmatpush1.bf16.msra.mxu0 0
    %117 = vmatprep.subr.bf16.mxu0 0
    %118 = vmatpush1.bf16.msra.mxu0 0
    %119 = vmatprep.subr.bf16.mxu0 0
    %120 = vmatpush1.bf16.msra.mxu0 0
    %121 = vmatprep.subr.bf16.mxu0 0
    %122 = vmatpush1.bf16.msra.mxu0 0
    %123 = vmatprep.subr.bf16.mxu0 0
    %124 = vmatpush1.bf16.msra.mxu0 0
    %125 = vmatprep.subr.bf16.mxu0 0
    %126 = vmatpush1.bf16.msra.mxu0 0
    %127 = vmatprep.subr.bf16.mxu0 0
    %128 = vmatpush1.bf16.msra.mxu0 0
    %129 = vmatprep.subr.bf16.mxu0 0
    %130 = vmatpush1.bf16.msra.mxu0 0
    %131 = vmatprep.subr.bf16.mxu0 0
    %132 = vmatpush1.bf16.msra.mxu0 0
    %133 = vmatprep.subr.bf16.mxu0 0
    %134 = vmatpush1.bf16.msra.mxu0 0
    %135 = vmatprep.mubr.bf16.mxu0 0
    %136 = vmatmul.mubr.bf16.gmra.mrb[0].mxu0 %v101
    %v137 = vpop.f32.mrb[0].mxu0
    %v138 = vadd.f32 %v86, %v137
    %v139 = vpop.f32.mrb[0].mxu0
    %v140 = vpop.f32.mrb[0].mxu0
    %v141 = vadd.f32 %v86, %v140
    %v142 = vpop.f32.mrb[0].mxu0
    %143 = vdwg.mxu0
    %144 = vst [vmem:[#allocation7] sm:$0xff] %v138
    %145 = vst [vmem:[#allocation7 + $0x8] sm:$0xff] %v141
    // Predicated region
    $region22: #{tpu_custom_call.1} parent=1 // pred_check
      _
    $region23: #{tpu_custom_call.1} parent=1 // pred_check_branch
      %147 = sbr.rel (0) target = $region25
    $region24: #{tpu_custom_call.1} parent=1 // pred_region
      %s149 = ssub.s32 256, 256
      %150 = vsyncadd [#allocation4], %s149
      %s151 = sshll.u32 [#allocation7], 4
      %s152 = int_to_ptr.vmem [resolvable:$true] %s151
      %157 = dma.vmem_to_hbm [thread:$0]  %s152, 256, %s3, [#allocation4], 128, 128, 8
    $region25: #{tpu_custom_call.1} parent=1 // pred_fallthru
      _
    // Predicated region
    $region26: #{tpu_custom_call.1} parent=1 // pred_check
      _
    $region27: #{tpu_custom_call.1} parent=1 // pred_check_branch
      %159 = sbr.rel (0) target = $region29
    $region28: #{tpu_custom_call.1} parent=1 // pred_region
      %160 = dma.done [#allocation4], 256
    $region29: #{tpu_custom_call.1} parent=1 // pred_fallthru
      _
    %161 = vsyncpa [#allocation3], 1
    %162 = vsyncpa [#allocation6], 1
    %163 = vsyncpa [#allocation4], 1

</llo_original>
